<compile_context>
chip_gen: v7x
topology: tpu7x:2x2x1
jax: 0.10.0
libtpu: 0.0.40
codegen_flags: <defaults>
</compile_context>

<pallas_src>
import functools

import numpy as np
import jax
import jax.numpy as jnp
from jax.experimental import pallas as pl
from jax.experimental.pallas import tpu as pltpu

LANE = 128
SUBLANE = 8


def _round_up(x, m):
    return (x + m - 1) // m * m


def _vmem_budget():
    """Generation-dependent VMEM limits (v5e/v6e: 128 MiB, v7x: 64 MiB per TC)."""
    try:
        cap = int(pltpu.get_tpu_info().vmem_capacity_bytes)
    except Exception:                       # conservative v7x-safe fallback
        cap = 64 * 1024 * 1024
    vmem_limit = max(32 * 1024 * 1024, (cap * 3) // 4)   # ~96 MiB v5e/v6e, ~48 MiB v7x
    tile_budget = vmem_limit // 2                        # headroom for compiler scratch
    return vmem_limit, tile_budget


def _sepconv_stats_kernel(xee_ref, xeeh_ref, xeo_ref, xeoh_ref, xoe_ref, xoo_ref,
                          w_ref, o_ref, st_ref, *,
                          hout, wout, fuse_k, mask_rows, mask_cols):
    """Separable 3x3/stride-2 conv (depthwise folded into pointwise -> all MACs on
    the MXU) plus per-channel partial sums for BatchNorm batch statistics.

    Block shapes (bf16 unless noted):
      xee_ref  : (1, TH, WQ+1, Cin)   even rows / even cols  (body rows)
      xeeh_ref : (1, 1,  WQ+1, Cin)   even rows / even cols  (one-row halo)
      xeo_ref  : (1, TH, WQ,   Cin)   even rows / odd  cols  (body rows)
      xeoh_ref : (1, 1,  WQ,   Cin)   even rows / odd  cols  (one-row halo)
      xoe_ref  : (1, TH, WQ+1, Cin)   odd  rows / even cols
      xoo_ref  : (1, TH, WQ,   Cin)   odd  rows / odd  cols
      w_ref    : (9*Cin, Coutp)       w_eff[k*Cin+c, co] = wd[k, c] * wp[c, co]
      o_ref    : (1, 1, TH*WQ, Coutp) conv output tile (bf16)
      st_ref   : (1, 1, 2, Coutp)     per-tile [sum, sum_of_squares] (f32)
    """
    th = xee_ref.shape[1]
    tw = xoo_ref.shape[2]
    cin = xoo_ref.shape[3]
    coutp = o_ref.shape[3]
    m = th * tw

    ee = xee_ref[0]                      # (TH, WQ+1, Cin)
    eo = xeo_ref[0]                      # (TH, WQ,   Cin)
    oe = xoe_ref[0]                      # (TH, WQ+1, Cin)
    oo = xoo_ref[0]                      # (TH, WQ,   Cin)

    # Even-row phases shifted down by one output row: body rows 1..TH-1 + halo row.
    if th > 1:
        ee_s = jnp.concatenate([ee[1:th], xeeh_ref[0]], axis=0)   # (TH, WQ+1, Cin)
        eo_s = jnp.concatenate([eo[1:th], xeoh_ref[0]], axis=0)   # (TH, WQ,   Cin)
    else:
        ee_s = xeeh_ref[0]
        eo_s = xeoh_ref[0]

    # Nine 3x3 taps, k = kh*3 + kw, all unit-stride static slices of the phases.
    taps = (
        ee[:, 0:tw, :], eo, ee[:, 1:tw + 1, :],
        oe[:, 0:tw, :], oo, oe[:, 1:tw + 1, :],
        ee_s[:, 0:tw, :], eo_s, ee_s[:, 1:tw + 1, :],
    )
    taps2d = [tp.reshape(m, cin) for tp in taps]

    if fuse_k:
        # Small Cin: stack the 9 taps along the contraction axis -> a single
        # (M, 9*Cin)x(9*Cin, Coutp) MXU matmul (fills the systolic depth, MXU
        # accumulates internally, no 8 VPU adds on the (M, Coutp) accumulator).
        lhs = jnp.concatenate(taps2d, axis=1)                      # (M, 9*Cin) bf16
        acc = jnp.dot(lhs, w_ref[...], preferred_element_type=jnp.float32)
    else:
        # Cin already >= systolic depth: 9 accumulated matmuls are fine.
        acc = jnp.dot(taps2d[0], w_ref[0:cin, :], preferred_element_type=jnp.float32)
        for k in range(1, 9):  # static unroll
            acc = acc + jnp.dot(taps2d[k], w_ref[k * cin:(k + 1) * cin, :],
                                preferred_element_type=jnp.float32)

    o_ref[0, 0] = acc.astype(o_ref.dtype)                          # lane-dense bf16 store

    # BatchNorm partial statistics in f32 straight from the accumulator (conv_out
    # is never re-read from HBM).  Mask only where spatial padding actually exists.
    red = acc
    if mask_rows or mask_cols:
        acc3 = acc.reshape(th, tw, coutp)
        valid = None
        if mask_rows:
            t_id = pl.program_id(1)
            row_ids = jax.lax.broadcasted_iota(jnp.int32, (th, tw), 0)
            valid = (row_ids + t_id * th) < hout
        if mask_cols:
            col_ids = jax.lax.broadcasted_iota(jnp.int32, (th, tw), 1)
            cmask = col_ids < wout
            valid = cmask if valid is None else (valid & cmask)
        red = jnp.where(valid[:, :, None], acc3, 0.0).reshape(m, coutp)
    st_ref[0, 0, 0:1, :] = jnp.sum(red, axis=0, keepdims=True)
    st_ref[0, 0, 1:2, :] = jnp.sum(red * red, axis=0, keepdims=True)


def _bn_relu_kernel(y_ref, scale_ref, shift_ref, o_ref):
    """Folded BatchNorm affine + ReLU; reads bf16 conv output, computes in f32."""
    y = y_ref[0, 0].astype(jnp.float32)                            # (M, Coutp)
    o_ref[0, 0] = jnp.maximum(y * scale_ref[...] + shift_ref[...], 0.0)


def conv_down_forward(x_nchw, wd_torch, wp_torch, gamma, beta, eps=1e-5):
    """Forward pass of ConvDown: (N, Cin, H, W) f32 -> (N, Cout, Hout, Wout) f32."""
    N, Cin, H, W = x_nchw.shape
    Cout = wp_torch.shape[0]
    Hout = (H - 1) // 2 + 1
    Wout = (W - 1) // 2 + 1

    # Lane-pad Cout so every conv/BN store is a full-width (>=128 lane) store
    # instead of masked vst.msk partial stores.  (For real ConvDown configs
    # Cout >= 128, so this adds no extra traffic there.)
    coutp = _round_up(Cout, LANE)
    wq = _round_up(max(Wout, SUBLANE), SUBLANE)          # padded output width
    cin_l = _round_up(Cin, LANE)
    k9 = 9 * Cin

    # ---- generation-dependent tile height from a VMEM budget --------------------
    vmem_limit, tile_budget = _vmem_budget()
    # Per-output-row VMEM bytes, including x2 pipeline double-buffering on every
    # in/out block plus in-kernel f32 accumulator / tap-staging temporaries.
    in_row = 2 * (2 * 4 * (wq + 16) * cin_l)             # 4 bf16 phase blocks, dbuf
    shift_row = 2 * 2 * (wq + 16) * cin_l                # ee_s / eo_s concat temps
    tap_row = 2 * 9 * wq * cin_l                         # materialized tap slices (bf16)
    cat_row = 2 * wq * _round_up(k9, LANE)               # (M, 9*Cin) stacked LHS (bf16)
    out_row = 2 * (2 * wq * coutp) + 4 * wq * coutp      # bf16 conv-out (dbuf) + f32 acc
    msk_row = 4 * wq * coutp                             # stats mask temp (f32)
    row_bytes = in_row + shift_row + tap_row + cat_row + out_row + msk_row
    w_bytes = 2 * (2 * _round_up(k9, 16) * coutp)        # bf16 weights, double-buffered
    th = int(max(1, min(Hout, (tile_budget - w_bytes) // max(row_bytes, 1))))
    # Keep enough grid steps that both v7x TensorCores stay busy.
    min_tiles = min(Hout, max(1, -(-4 // N)))
    th = min(th, -(-Hout // min_tiles))
    nht = -(-Hout // th)                                 # cdiv
    hq = nht * th                                        # padded output height
    m = th * wq

    # ---- glue: NCHW -> NHWC (bf16), ONE pad covering conv pad=1 + tile padding,
    #      four stride-2 phase slices (~2 bf16 passes over the input). ------------
    # TODO(synk): fully fuse this glue by reading padded NHWC row bands with
    # memory_space=pl.ANY + manual make_async_copy and splitting phases in VMEM.
    xf = jnp.transpose(x_nchw, (0, 2, 3, 1)).astype(jnp.bfloat16)
    xp = jnp.pad(xf, ((0, 0), (1, 2 * hq - H), (1, 2 * wq - W), (0, 0)))
    x_ee = xp[:, 0::2, 0::2, :]        # (N, hq+1, wq+1, Cin)
    x_eo = xp[:, 0::2, 1::2, :]        # (N, hq+1, wq,   Cin)
    x_oe = xp[:, 1::2, 0::2, :]        # (N, hq,   wq+1, Cin)
    x_oo = xp[:, 1::2, 1::2, :]        # (N, hq,   wq,   Cin)

    # Fold depthwise into pointwise: w_eff[k*Cin+c, co] = wd[c, kh, kw] * wp[co, c].
    wd9 = jnp.transpose(wd_torch[:, 0, :, :], (1, 2, 0)).reshape(9, Cin).astype(jnp.float32)
    wpw = jnp.transpose(wp_torch[:, :, 0, 0], (1, 0)).astype(jnp.float32)   # (Cin, Cout)
    w_eff = (wd9[:, :, None] * wpw[None, :, :]).reshape(k9, Cout)
    w_eff = jnp.pad(w_eff, ((0, 0), (0, coutp - Cout))).astype(jnp.bfloat16)

    fuse_k = Cin < LANE
    mask_rows = hq != Hout
    mask_cols = wq != Wout

    # ---- Pallas kernel 1: separable conv (MXU) + BN partial stats ---------------
    conv_out, stats = pl.pallas_call(
        functools.partial(_sepconv_stats_kernel, hout=Hout, wout=Wout,
                          fuse_k=fuse_k, mask_rows=mask_rows, mask_cols=mask_cols),
        out_shape=(
            jax.ShapeDtypeStruct((N, nht, m, coutp), jnp.bfloat16),
            jax.ShapeDtypeStruct((N, nht, 2, coutp), jnp.float32),
        ),
        grid=(N, nht),
        in_specs=[
            # even/even: th-row body + 1-row halo (block size 1 -> element index)
            pl.BlockSpec((1, th, wq + 1, Cin), lambda n, t: (n, t, 0, 0)),
            pl.BlockSpec((1, 1, wq + 1, Cin), lambda n, t: (n, (t + 1) * th, 0, 0)),
            # even/odd: body + halo
            pl.BlockSpec((1, th, wq, Cin), lambda n, t: (n, t, 0, 0)),
            pl.BlockSpec((1, 1, wq, Cin), lambda n, t: (n, (t + 1) * th, 0, 0)),
            # odd/even, odd/odd: plain non-overlapping tiles
            pl.BlockSpec((1, th, wq + 1, Cin), lambda n, t: (n, t, 0, 0)),
            pl.BlockSpec((1, th, wq, Cin), lambda n, t: (n, t, 0, 0)),
            # folded weights, resident across the grid
            pl.BlockSpec((k9, coutp), lambda n, t: (0, 0)),
        ],
        out_specs=(
            pl.BlockSpec((1, 1, m, coutp), lambda n, t: (n, t, 0, 0)),
            pl.BlockSpec((1, 1, 2, coutp), lambda n, t: (n, t, 0, 0)),
        ),
        compiler_params=pltpu.CompilerParams(
            dimension_semantics=("parallel", "parallel"),
            vmem_limit_bytes=vmem_limit),
    )(x_ee, x_ee, x_eo, x_eo, x_oe, x_oo, w_eff)

    # ---- tiny XLA finish of BatchNorm2d training-mode batch statistics ----------
    count = float(N * Hout * Wout)
    ssum = jnp.sum(stats[:, :, 0, :], axis=(0, 1))
    ssq = jnp.sum(stats[:, :, 1, :], axis=(0, 1))
    mean = ssum / count
    # NOTE: E[x^2]-E[x]^2 in f32 can cancel when |mean| >> std; fine for activations.
    var = jnp.maximum(ssq / count - mean * mean, 0.0)    # biased var (PyTorch BN norm)
    gamma_p = jnp.pad(gamma.astype(jnp.float32), (0, coutp - Cout))
    beta_p = jnp.pad(beta.astype(jnp.float32), (0, coutp - Cout))
    inv = gamma_p * jax.lax.rsqrt(var + eps)
    scale = inv.reshape(1, coutp)
    shift = (beta_p - mean * inv).reshape(1, coutp)

    # ---- Pallas kernel 2: fused BN affine + ReLU (same lane-dense tiling) -------
    y = pl.pallas_call(
        _bn_relu_kernel,
        out_shape=jax.ShapeDtypeStruct((N, nht, m, coutp), jnp.float32),
        grid=(N, nht),
        in_specs=[
            pl.BlockSpec((1, 1, m, coutp), lambda n, t: (n, t, 0, 0)),
            pl.BlockSpec((1, coutp), lambda n, t: (0, 0)),
            pl.BlockSpec((1, coutp), lambda n, t: (0, 0)),
        ],
        out_specs=pl.BlockSpec((1, 1, m, coutp), lambda n, t: (n, t, 0, 0)),
        compiler_params=pltpu.CompilerParams(
            dimension_semantics=("parallel", "parallel"),
            vmem_limit_bytes=vmem_limit),
    )(conv_out, scale, shift)

    # Drop spatial/channel padding and return NCHW like the PyTorch module.
    # TODO(synk): fold this crop + transpose into kernel 2 (or return NHWC); with
    # small Wout an in-kernel NCHW store would be lane-sparse, so it stays in XLA.
    y = y.reshape(N, hq, wq, coutp)[:, :Hout, :Wout, :Cout]
    return jnp.transpose(y, (0, 3, 1, 2))


if __name__ == "__main__":
    key = jax.random.PRNGKey(0)
    N, Cin, Cout, H, W = 2, 4, 8, 16, 16
    k1, k2, k3 = jax.random.split(key, 3)

    x = jax.random.normal(k1, (N, Cin, H, W), jnp.float32)
    # Deterministic synthetic parameters (shapes match nn.Conv2d / nn.BatchNorm2d)
    wd_torch = jax.random.normal(k2, (Cin, 1, 3, 3), jnp.float32) * 0.2     # depthwise
    wp_torch = jax.random.normal(k3, (Cout, Cin, 1, 1), jnp.float32) * 0.2  # pointwise
    gamma = jnp.ones((Cout,), jnp.float32)     # BatchNorm2d.weight default
    beta = jnp.zeros((Cout,), jnp.float32)     # BatchNorm2d.bias default

    out = conv_down_forward(x, wd_torch, wp_torch, gamma, beta)
    out = jax.block_until_ready(out)

    # pure-JAX f32 reference (lax.conv + batch-stat BN + ReLU); the kernel runs the
    # MACs in bf16 on the MXU, so compare at bf16-appropriate tolerance.
    dn = ("NCHW", "OIHW", "NCHW")
    dwo = jax.lax.conv_general_dilated(x, wd_torch, (2, 2), ((1, 1), (1, 1)),
                                       dimension_numbers=dn, feature_group_count=Cin)
    pwo = jax.lax.conv_general_dilated(dwo, wp_torch, (1, 1), ((0, 0), (0, 0)),
                                       dimension_numbers=dn)
    mu = pwo.mean(axis=(0, 2, 3), keepdims=True)
    vv = pwo.var(axis=(0, 2, 3), keepdims=True)
    ref = jnp.maximum((pwo - mu) / jnp.sqrt(vv + 1e-5)
                      * gamma.reshape(1, -1, 1, 1) + beta.reshape(1, -1, 1, 1), 0.0)

    assert out.shape == (N, Cout, 8, 8), out.shape
    np.testing.assert_allclose(np.asarray(out), np.asarray(ref), rtol=2e-2, atol=2e-2)
    print("KERNEL_OK")
</pallas_src>

<mosaic_0001>
module attributes {stable_mosaic.version = 11 : i64} {
  func.func @_sepconv_stats_kernel(%arg0: i32, %arg1: i32, %arg2: memref<1x4x9x4xbf16, #tpu.memory_space<vmem>>, %arg3: memref<1x1x9x4xbf16, #tpu.memory_space<vmem>>, %arg4: memref<1x4x8x4xbf16, #tpu.memory_space<vmem>>, %arg5: memref<1x1x8x4xbf16, #tpu.memory_space<vmem>>, %arg6: memref<1x4x9x4xbf16, #tpu.memory_space<vmem>>, %arg7: memref<1x4x8x4xbf16, #tpu.memory_space<vmem>>, %arg8: memref<36x128xbf16, #tpu.memory_space<vmem>>, %arg9: memref<1x1x32x128xbf16, #tpu.memory_space<vmem>>, %arg10: memref<1x1x2x128xf32, #tpu.memory_space<vmem>>) attributes {dimension_semantics = [#tpu.dimension_semantics<parallel>, #tpu.dimension_semantics<parallel>], iteration_bounds = array<i64: 2, 2>, scalar_prefetch = 0 : i64, scratch_operands = 0 : i64, tpu.core_type = #tpu.core_type<tc>, window_params = [{transform_indices = @transform_0, window_bounds = array<i64: 1, 4, 9, 4>}, {transform_indices = @transform_1, window_bounds = array<i64: 1, 1, 9, 4>}, {transform_indices = @transform_2, window_bounds = array<i64: 1, 4, 8, 4>}, {transform_indices = @transform_3, window_bounds = array<i64: 1, 1, 8, 4>}, {transform_indices = @transform_4, window_bounds = array<i64: 1, 4, 9, 4>}, {transform_indices = @transform_5, window_bounds = array<i64: 1, 4, 8, 4>}, {pipeline_mode = #tpu.pipeline_mode<synchronous>, transform_indices = @transform_6, window_bounds = array<i64: 36, 128>}, {transform_indices = @transform_7, window_bounds = array<i64: 1, 1, 32, 128>}, {transform_indices = @transform_8, window_bounds = array<i64: 1, 1, 2, 128>}]} {
    %c0 = arith.constant 0 : index
    %c0_0 = arith.constant 0 : index
    %c0_1 = arith.constant 0 : index
    %c0_2 = arith.constant 0 : index
    %0 = vector.load %arg2[%c0, %c0_0, %c0_1, %c0_2] : memref<1x4x9x4xbf16, #tpu.memory_space<vmem>>, vector<1x4x9x4xbf16>
    %1 = vector.shape_cast %0 : vector<1x4x9x4xbf16> to vector<4x9x4xbf16>
    %c0_3 = arith.constant 0 : index
    %c0_4 = arith.constant 0 : index
    %c0_5 = arith.constant 0 : index
    %c0_6 = arith.constant 0 : index
    %2 = vector.load %arg4[%c0_3, %c0_4, %c0_5, %c0_6] : memref<1x4x8x4xbf16, #tpu.memory_space<vmem>>, vector<1x4x8x4xbf16>
    %3 = vector.shape_cast %2 : vector<1x4x8x4xbf16> to vector<4x8x4xbf16>
    %c0_7 = arith.constant 0 : index
    %c0_8 = arith.constant 0 : index
    %c0_9 = arith.constant 0 : index
    %c0_10 = arith.constant 0 : index
    %4 = vector.load %arg6[%c0_7, %c0_8, %c0_9, %c0_10] : memref<1x4x9x4xbf16, #tpu.memory_space<vmem>>, vector<1x4x9x4xbf16>
    %5 = vector.shape_cast %4 : vector<1x4x9x4xbf16> to vector<4x9x4xbf16>
    %c0_11 = arith.constant 0 : index
    %c0_12 = arith.constant 0 : index
    %c0_13 = arith.constant 0 : index
    %c0_14 = arith.constant 0 : index
    %6 = vector.load %arg7[%c0_11, %c0_12, %c0_13, %c0_14] : memref<1x4x8x4xbf16, #tpu.memory_space<vmem>>, vector<1x4x8x4xbf16>
    %7 = vector.shape_cast %6 : vector<1x4x8x4xbf16> to vector<4x8x4xbf16>
    %8 = vector.extract_strided_slice %1 {offsets = [1, 0, 0], sizes = [3, 9, 4], strides = [1, 1, 1]} : vector<4x9x4xbf16> to vector<3x9x4xbf16>
    %c0_15 = arith.constant 0 : index
    %c0_16 = arith.constant 0 : index
    %c0_17 = arith.constant 0 : index
    %c0_18 = arith.constant 0 : index
    %9 = vector.load %arg3[%c0_15, %c0_16, %c0_17, %c0_18] : memref<1x1x9x4xbf16, #tpu.memory_space<vmem>>, vector<1x1x9x4xbf16>
    %10 = vector.shape_cast %9 : vector<1x1x9x4xbf16> to vector<1x9x4xbf16>
    %11 = tpu.concatenate %8, %10 in 0 : vector<3x9x4xbf16>, vector<1x9x4xbf16> -> vector<4x9x4xbf16>
    %12 = vector.extract_strided_slice %3 {offsets = [1, 0, 0], sizes = [3, 8, 4], strides = [1, 1, 1]} : vector<4x8x4xbf16> to vector<3x8x4xbf16>
    %c0_19 = arith.constant 0 : index
    %c0_20 = arith.constant 0 : index
    %c0_21 = arith.constant 0 : index
    %c0_22 = arith.constant 0 : index
    %13 = vector.load %arg5[%c0_19, %c0_20, %c0_21, %c0_22] : memref<1x1x8x4xbf16, #tpu.memory_space<vmem>>, vector<1x1x8x4xbf16>
    %14 = vector.shape_cast %13 : vector<1x1x8x4xbf16> to vector<1x8x4xbf16>
    %15 = tpu.concatenate %12, %14 in 0 : vector<3x8x4xbf16>, vector<1x8x4xbf16> -> vector<4x8x4xbf16>
    %16 = vector.extract_strided_slice %1 {offsets = [0, 0, 0], sizes = [4, 8, 4], strides = [1, 1, 1]} : vector<4x9x4xbf16> to vector<4x8x4xbf16>
    %17 = vector.extract_strided_slice %1 {offsets = [0, 1, 0], sizes = [4, 8, 4], strides = [1, 1, 1]} : vector<4x9x4xbf16> to vector<4x8x4xbf16>
    %18 = vector.extract_strided_slice %5 {offsets = [0, 0, 0], sizes = [4, 8, 4], strides = [1, 1, 1]} : vector<4x9x4xbf16> to vector<4x8x4xbf16>
    %19 = vector.extract_strided_slice %5 {offsets = [0, 1, 0], sizes = [4, 8, 4], strides = [1, 1, 1]} : vector<4x9x4xbf16> to vector<4x8x4xbf16>
    %20 = vector.extract_strided_slice %11 {offsets = [0, 0, 0], sizes = [4, 8, 4], strides = [1, 1, 1]} : vector<4x9x4xbf16> to vector<4x8x4xbf16>
    %21 = vector.extract_strided_slice %11 {offsets = [0, 1, 0], sizes = [4, 8, 4], strides = [1, 1, 1]} : vector<4x9x4xbf16> to vector<4x8x4xbf16>
    %22 = vector.shape_cast %16 : vector<4x8x4xbf16> to vector<32x4xbf16>
    %23 = vector.shape_cast %3 : vector<4x8x4xbf16> to vector<32x4xbf16>
    %24 = vector.shape_cast %17 : vector<4x8x4xbf16> to vector<32x4xbf16>
    %25 = vector.shape_cast %18 : vector<4x8x4xbf16> to vector<32x4xbf16>
    %26 = vector.shape_cast %7 : vector<4x8x4xbf16> to vector<32x4xbf16>
    %27 = vector.shape_cast %19 : vector<4x8x4xbf16> to vector<32x4xbf16>
    %28 = vector.shape_cast %20 : vector<4x8x4xbf16> to vector<32x4xbf16>
    %29 = vector.shape_cast %15 : vector<4x8x4xbf16> to vector<32x4xbf16>
    %30 = vector.shape_cast %21 : vector<4x8x4xbf16> to vector<32x4xbf16>
    %31 = tpu.concatenate %22, %23, %24, %25, %26, %27, %28, %29, %30 in 1 : vector<32x4xbf16>, vector<32x4xbf16>, vector<32x4xbf16>, vector<32x4xbf16>, vector<32x4xbf16>, vector<32x4xbf16>, vector<32x4xbf16>, vector<32x4xbf16>, vector<32x4xbf16> -> vector<32x36xbf16>
    %c0_23 = arith.constant 0 : index
    %c0_24 = arith.constant 0 : index
    %32 = vector.load %arg8[%c0_23, %c0_24] : memref<36x128xbf16, #tpu.memory_space<vmem>>, vector<36x128xbf16>
    %cst = arith.constant dense<0.000000e+00> : vector<32x128xf32>
    %33 = tpu.matmul %31, %32, %cst {dimension_numbers = #tpu.dot_dimension_numbers<[1], [0], [0], [1], [0, 0, 1, 1], [], []>} : vector<32x36xbf16>, vector<36x128xbf16>, vector<32x128xf32> -> vector<32x128xf32>
    %34 = arith.truncf %33 : vector<32x128xf32> to vector<32x128xbf16>
    %c0_25 = arith.constant 0 : index
    %c0_26 = arith.constant 0 : index
    %c0_27 = arith.constant 0 : index
    %c0_28 = arith.constant 0 : index
    %35 = vector.load %arg9[%c0_25, %c0_26, %c0_27, %c0_28] : memref<1x1x32x128xbf16, #tpu.memory_space<vmem>>, vector<1x1x32x128xbf16>
    %36 = vector.shape_cast %35 : vector<1x1x32x128xbf16> to vector<32x128xbf16>
    %37 = vector.shape_cast %34 : vector<32x128xbf16> to vector<1x1x32x128xbf16>
    tpu.vector_store %arg9[%c0_25, %c0_26, %c0_27, %c0_28], %37 {strides = array<i32>} : memref<1x1x32x128xbf16, #tpu.memory_space<vmem>>, vector<1x1x32x128xbf16>,
    %cst_29 = arith.constant dense<0.000000e+00> : vector<128xf32>
    %38 = vector.multi_reduction <add>, %33, %cst_29 [0] : vector<32x128xf32> to vector<128xf32>
    %39 = vector.shape_cast %38 : vector<128xf32> to vector<1x128xf32>
    %c0_30 = arith.constant 0 : index
    %c0_31 = arith.constant 0 : index
    %c0_32 = arith.constant 0 : index
    %c0_33 = arith.constant 0 : index
    %40 = vector.load %arg10[%c0_30, %c0_31, %c0_32, %c0_33] : memref<1x1x2x128xf32, #tpu.memory_space<vmem>>, vector<1x1x1x128xf32>
    %41 = vector.shape_cast %40 : vector<1x1x1x128xf32> to vector<1x128xf32>
    %42 = vector.shape_cast %39 : vector<1x128xf32> to vector<1x1x1x128xf32>
    tpu.vector_store %arg10[%c0_30, %c0_31, %c0_32, %c0_33], %42 {strides = array<i32>} : memref<1x1x2x128xf32, #tpu.memory_space<vmem>>, vector<1x1x1x128xf32>,
    %43 = arith.mulf %33, %33 : vector<32x128xf32>
    %cst_34 = arith.constant dense<0.000000e+00> : vector<128xf32>
    %44 = vector.multi_reduction <add>, %43, %cst_34 [0] : vector<32x128xf32> to vector<128xf32>
    %45 = vector.shape_cast %44 : vector<128xf32> to vector<1x128xf32>
    %c0_35 = arith.constant 0 : index
    %c0_36 = arith.constant 0 : index
    %c1 = arith.constant 1 : index
    %c0_37 = arith.constant 0 : index
    %46 = vector.load %arg10[%c0_35, %c0_36, %c1, %c0_37] : memref<1x1x2x128xf32, #tpu.memory_space<vmem>>, vector<1x1x1x128xf32>
    %47 = vector.shape_cast %46 : vector<1x1x1x128xf32> to vector<1x128xf32>
    %48 = vector.shape_cast %45 : vector<1x128xf32> to vector<1x1x1x128xf32>
    tpu.vector_store %arg10[%c0_35, %c0_36, %c1, %c0_37], %48 {strides = array<i32>} : memref<1x1x2x128xf32, #tpu.memory_space<vmem>>, vector<1x1x1x128xf32>,
    return
  }
  func.func @transform_0(%arg0: i32, %arg1: i32) -> (i32, i32, i32, i32) {
    %c0_i32 = arith.constant 0 : i32
    %c0_i32_0 = arith.constant 0 : i32
    %c0_i32_1 = arith.constant 0 : i32
    return %arg0, %arg1, %c0_i32, %c0_i32_0 : i32, i32, i32, i32
  }
  func.func @transform_1(%arg0: i32, %arg1: i32) -> (i32, i32, i32, i32) {
    %c1_i32 = arith.constant 1 : i32
    %0 = arith.addi %arg1, %c1_i32 : i32
    %c4_i32 = arith.constant 4 : i32
    %1 = arith.muli %0, %c4_i32 : i32
    %c0_i32 = arith.constant 0 : i32
    %c0_i32_0 = arith.constant 0 : i32
    %c0_i32_1 = arith.constant 0 : i32
    return %arg0, %1, %c0_i32, %c0_i32_0 : i32, i32, i32, i32
  }
  func.func @transform_2(%arg0: i32, %arg1: i32) -> (i32, i32, i32, i32) {
    %c0_i32 = arith.constant 0 : i32
    %c0_i32_0 = arith.constant 0 : i32
    %c0_i32_1 = arith.constant 0 : i32
    return %arg0, %arg1, %c0_i32, %c0_i32_0 : i32, i32, i32, i32
  }
  func.func @transform_3(%arg0: i32, %arg1: i32) -> (i32, i32, i32, i32) {
    %c1_i32 = arith.constant 1 : i32
    %0 = arith.addi %arg1, %c1_i32 : i32
    %c4_i32 = arith.constant 4 : i32
    %1 = arith.muli %0, %c4_i32 : i32
    %c0_i32 = arith.constant 0 : i32
    %c0_i32_0 = arith.constant 0 : i32
    %c0_i32_1 = arith.constant 0 : i32
    return %arg0, %1, %c0_i32, %c0_i32_0 : i32, i32, i32, i32
  }
  func.func @transform_4(%arg0: i32, %arg1: i32) -> (i32, i32, i32, i32) {
    %c0_i32 = arith.constant 0 : i32
    %c0_i32_0 = arith.constant 0 : i32
    %c0_i32_1 = arith.constant 0 : i32
    return %arg0, %arg1, %c0_i32, %c0_i32_0 : i32, i32, i32, i32
  }
  func.func @transform_5(%arg0: i32, %arg1: i32) -> (i32, i32, i32, i32) {
    %c0_i32 = arith.constant 0 : i32
    %c0_i32_0 = arith.constant 0 : i32
    %c0_i32_1 = arith.constant 0 : i32
    return %arg0, %arg1, %c0_i32, %c0_i32_0 : i32, i32, i32, i32
  }
  func.func @transform_6(%arg0: i32, %arg1: i32) -> (i32, i32) {
    %c0_i32 = arith.constant 0 : i32
    %c0_i32_0 = arith.constant 0 : i32
    %c0_i32_1 = arith.constant 0 : i32
    return %c0_i32, %c0_i32_0 : i32, i32
  }
  func.func @transform_7(%arg0: i32, %arg1: i32) -> (i32, i32, i32, i32) {
    %c0_i32 = arith.constant 0 : i32
    %c0_i32_0 = arith.constant 0 : i32
    %c0_i32_1 = arith.constant 0 : i32
    return %arg0, %arg1, %c0_i32, %c0_i32_0 : i32, i32, i32, i32
  }
  func.func @transform_8(%arg0: i32, %arg1: i32) -> (i32, i32, i32, i32) {
    %c0_i32 = arith.constant 0 : i32
    %c0_i32_0 = arith.constant 0 : i32
    %c0_i32_1 = arith.constant 0 : i32
    return %arg0, %arg1, %c0_i32, %c0_i32_0 : i32, i32, i32, i32
  }
}

</mosaic_0001>

<llo_original>
// kernel: tpu_custom_call.1
$region0: #{tpu_custom_call.1}
  #allocation0 [shape = 'u32[]', space=smem, size = 0x4, offset = 0x4, fixed_abs, tag = 'smem constant byte address 0x4 - core index']
  #allocation1 [shape = 'u32[144,128]{1,0:T(1,128)}', space=vmem, size = 0x12000, scoped, tag = 'internal scratch']
  %s0 = inlined_call_operand.vmem [shape: bf16[2,9,9,4], index: 0, kind: input, shape index: {}]
  %s1 = inlined_call_operand.vmem [shape: bf16[2,9,9,4], index: 1, kind: input, shape index: {}]
  %s2 = inlined_call_operand.vmem [shape: bf16[2,9,8,4], index: 2, kind: input, shape index: {}]
  %s3 = inlined_call_operand.vmem [shape: bf16[2,9,8,4], index: 3, kind: input, shape index: {}]
  %s4 = inlined_call_operand.vmem [shape: bf16[2,8,9,4], index: 4, kind: input, shape index: {}]
  %s5 = inlined_call_operand.vmem [shape: bf16[2,8,8,4], index: 5, kind: input, shape index: {}]
  %s6 = inlined_call_operand.vmem [shape: bf16[36,128], index: 6, kind: input, shape index: {}]
  %s7 = inlined_call_operand.hbm [shape: bf16[2,2,32,128], index: 7, kind: output, shape index: {0}]
  %s8 = inlined_call_operand.hbm [shape: f32[2,2,2,128], index: 8, kind: output, shape index: {1}]
  %9 = xla_tuple %s7, %s8
  %s10 = sld [smem:[#allocation0]]
  $region69: #{tpu_custom_call.1} parent=0
    _
  %s12 = ssub.s32 1, %s10
  %s13 = scalar_select 0, %s12, %s10
  $region1: #{tpu_custom_call.1} parent=0
    #allocation2 [shape = 'u8[16384]{0}', space=vmem, size = 0x4000, scoped, tag = 'output window, operand 0']
    #allocation3 [shape = 's32[2]{0}', space=sflag, size = 0x8, scoped, tag = 'scoped memory for tpu_custom_call.1']
    #allocation4 [shape = 'u8[2048]{0}', space=vmem, size = 0x800, scoped, tag = 'output window, operand 1']
    #allocation5 [shape = 's32[2]{0}', space=sflag, size = 0x8, scoped, tag = 'scoped memory for tpu_custom_call.1']
    %14 = vsyncpa [#allocation3], 0
    %s15 = scalar_lea.sflag [#allocation3], 1
    %16 = vsyncpa %s15, 0
    %17 = vsyncpa [#allocation5], 0
    %s18 = scalar_lea.sflag [#allocation5], 1
    %19 = vsyncpa %s18, 0
    loop: start=0, step=1, limit=6
    $region2: #{tpu_custom_call.1} parent=1 // loop_pre_header
      _
    $region3: #{tpu_custom_call.1} parent=1 // loop_header
      %s21 = sphi 0, %s25
      %p22 = scmp.ge.s32.totalorder %s21, 6
      %s28 = sphi 0, %s40
      %s29 = sphi 0, %s36
      %s30 = sphi 0, %s28
      %s31 = sphi 0, %s29
      %s32 = sphi 0, %s30
      %s33 = sphi 0, %s31
      %s45 = sphi 0, %s47
      %s48 = sphi 0, %s45
      %s49 = sphi 0, %s48
      %s65 = sphi 0, %s49
      %s77 = sphi 0, %s79
      %s80 = sphi 0, %s77
      %s81 = sphi 0, %s80
      %s97 = sphi 0, %s81
      %s105 = sphi 0, %s107
      %s108 = sphi 0, %s105
      %s109 = sphi 0, %s108
      %s125 = sphi 0, %s109
      %s137 = sphi 0, %s139
      %s140 = sphi 0, %s137
      %s141 = sphi 0, %s140
      %s157 = sphi 0, %s141
      %s165 = sphi 0, %s167
      %s168 = sphi 0, %s165
      %s169 = sphi 0, %s168
      %s185 = sphi 0, %s169
      %s193 = sphi 0, %s195
      %s196 = sphi 0, %s193
      %s197 = sphi 0, %s196
      %s213 = sphi 0, %s197
      %s217 = sphi 0, %s217
      %s219 = sphi 0, %s217
      %s220 = sphi 0, %s219
      %s234 = sphi 0, %s220
      %s242 = sphi 0, %s244
      %s245 = sphi 0, %s242
      %s246 = sphi 0, %s245
      %s262 = sphi 0, %s246
      %s270 = sphi 0, %s272
      %s273 = sphi 0, %s270
      %s274 = sphi 0, %s273
      %s290 = sphi 0, %s274
    $region4: #{tpu_custom_call.1} parent=1 // loop_header_branch
      %24 = sbr.rel (%p22) target = $region8
    $region5: #{tpu_custom_call.1} parent=1 // loop_body
      %s26 = ssub.s32 %s21, 1
      %s27 = ssub.s32 %s21, 2
      %s34 = sadd.s32 1, %s29
      %p35 = scmp.ge.s32.totalorder %s34, 2
      %s36 = scalar_select %p35, 0, %s34
      %s37 = sadd.s32 1, %s28
      %s38 = scalar_select %p35, %s37, %s28
      %p39 = scmp.ge.s32.totalorder %s38, 2
      %s40 = scalar_select %p39, 0, %s38
      %s41 = ssub.s32 %s28, %s40
      %s42 = ssub.s32 %s29, %s36
      %s43 = sor.u32 %s41, %s42
      %p44 = scmp.eq.s32.totalorder %s43, 0
      %s46 = sadd.s32 %s45, 1
      %s47 = scalar_select %p44, %s45, %s46
      %p50 = pneg %p44
      %p51 = scmp.eq.s32.totalorder %s21, 3
      %p52 = por %p50, %p51
      %p53 = scmp.ne.s32.totalorder %s45, %s48
      %p54 = scmp.eq.s32.totalorder %s21, 0
      %p55 = por %p53, %p54
      %p56 = scmp.ne.s32.totalorder %s45, %s48
      %p57 = scmp.eq.s32.totalorder %s26, 3
      %p58 = por %p56, %p57
      %p59 = scmp.ne.s32.totalorder %s48, %s49
      %p60 = scmp.eq.s32.totalorder %s26, 0
      %p61 = por %p59, %p60
      %p62 = scmp.ne.s32.totalorder %s48, %s49
      %p63 = scmp.eq.s32.totalorder %s27, 3
      %p64 = por %p62, %p63
      %p66 = scmp.ne.s32.totalorder %s49, %s65
      %p67 = scmp.eq.s32.totalorder %s27, 0
      %p68 = por %p66, %p67
      %s69 = sadd.s32 %s29, 1
      %s70 = smul.u32 %s69, 4
      %s71 = sadd.s32 %s36, 1
      %s72 = smul.u32 %s71, 4
      %s73 = ssub.s32 %s28, %s40
      %s74 = ssub.s32 %s70, %s72
      %s75 = sor.u32 %s73, %s74
      %p76 = scmp.eq.s32.totalorder %s75, 0
      %s78 = sadd.s32 %s77, 1
      %s79 = scalar_select %p76, %s77, %s78
      %p82 = pneg %p76
      %p83 = scmp.eq.s32.totalorder %s21, 3
      %p84 = por %p82, %p83
      %p85 = scmp.ne.s32.totalorder %s77, %s80
      %p86 = scmp.eq.s32.totalorder %s21, 0
      %p87 = por %p85, %p86
      %p88 = scmp.ne.s32.totalorder %s77, %s80
      %p89 = scmp.eq.s32.totalorder %s26, 3
      %p90 = por %p88, %p89
      %p91 = scmp.ne.s32.totalorder %s80, %s81
      %p92 = scmp.eq.s32.totalorder %s26, 0
      %p93 = por %p91, %p92
      %p94 = scmp.ne.s32.totalorder %s80, %s81
      %p95 = scmp.eq.s32.totalorder %s27, 3
      %p96 = por %p94, %p95
      %p98 = scmp.ne.s32.totalorder %s81, %s97
      %p99 = scmp.eq.s32.totalorder %s27, 0
      %p100 = por %p98, %p99
      %s101 = ssub.s32 %s28, %s40
      %s102 = ssub.s32 %s29, %s36
      %s103 = sor.u32 %s101, %s102
      %p104 = scmp.eq.s32.totalorder %s103, 0
      %s106 = sadd.s32 %s105, 1
      %s107 = scalar_select %p104, %s105, %s106
      %p110 = pneg %p104
      %p111 = scmp.eq.s32.totalorder %s21, 3
      %p112 = por %p110, %p111
      %p113 = scmp.ne.s32.totalorder %s105, %s108
      %p114 = scmp.eq.s32.totalorder %s21, 0
      %p115 = por %p113, %p114
      %p116 = scmp.ne.s32.totalorder %s105, %s108
      %p117 = scmp.eq.s32.totalorder %s26, 3
      %p118 = por %p116, %p117
      %p119 = scmp.ne.s32.totalorder %s108, %s109
      %p120 = scmp.eq.s32.totalorder %s26, 0
      %p121 = por %p119, %p120
      %p122 = scmp.ne.s32.totalorder %s108, %s109
      %p123 = scmp.eq.s32.totalorder %s27, 3
      %p124 = por %p122, %p123
      %p126 = scmp.ne.s32.totalorder %s109, %s125
      %p127 = scmp.eq.s32.totalorder %s27, 0
      %p128 = por %p126, %p127
      %s129 = sadd.s32 %s29, 1
      %s130 = smul.u32 %s129, 4
      %s131 = sadd.s32 %s36, 1
      %s132 = smul.u32 %s131, 4
      %s133 = ssub.s32 %s28, %s40
      %s134 = ssub.s32 %s130, %s132
      %s135 = sor.u32 %s133, %s134
      %p136 = scmp.eq.s32.totalorder %s135, 0
      %s138 = sadd.s32 %s137, 1
      %s139 = scalar_select %p136, %s137, %s138
      %p142 = pneg %p136
      %p143 = scmp.eq.s32.totalorder %s21, 3
      %p144 = por %p142, %p143
      %p145 = scmp.ne.s32.totalorder %s137, %s140
      %p146 = scmp.eq.s32.totalorder %s21, 0
      %p147 = por %p145, %p146
      %p148 = scmp.ne.s32.totalorder %s137, %s140
      %p149 = scmp.eq.s32.totalorder %s26, 3
      %p150 = por %p148, %p149
      %p151 = scmp.ne.s32.totalorder %s140, %s141
      %p152 = scmp.eq.s32.totalorder %s26, 0
      %p153 = por %p151, %p152
      %p154 = scmp.ne.s32.totalorder %s140, %s141
      %p155 = scmp.eq.s32.totalorder %s27, 3
      %p156 = por %p154, %p155
      %p158 = scmp.ne.s32.totalorder %s141, %s157
      %p159 = scmp.eq.s32.totalorder %s27, 0
      %p160 = por %p158, %p159
      %s161 = ssub.s32 %s28, %s40
      %s162 = ssub.s32 %s29, %s36
      %s163 = sor.u32 %s161, %s162
      %p164 = scmp.eq.s32.totalorder %s163, 0
      %s166 = sadd.s32 %s165, 1
      %s167 = scalar_select %p164, %s165, %s166
      %p170 = pneg %p164
      %p171 = scmp.eq.s32.totalorder %s21, 3
      %p172 = por %p170, %p171
      %p173 = scmp.ne.s32.totalorder %s165, %s168
      %p174 = scmp.eq.s32.totalorder %s21, 0
      %p175 = por %p173, %p174
      %p176 = scmp.ne.s32.totalorder %s165, %s168
      %p177 = scmp.eq.s32.totalorder %s26, 3
      %p178 = por %p176, %p177
      %p179 = scmp.ne.s32.totalorder %s168, %s169
      %p180 = scmp.eq.s32.totalorder %s26, 0
      %p181 = por %p179, %p180
      %p182 = scmp.ne.s32.totalorder %s168, %s169
      %p183 = scmp.eq.s32.totalorder %s27, 3
      %p184 = por %p182, %p183
      %p186 = scmp.ne.s32.totalorder %s169, %s185
      %p187 = scmp.eq.s32.totalorder %s27, 0
      %p188 = por %p186, %p187
      %s189 = ssub.s32 %s28, %s40
      %s190 = ssub.s32 %s29, %s36
      %s191 = sor.u32 %s189, %s190
      %p192 = scmp.eq.s32.totalorder %s191, 0
      %s194 = sadd.s32 %s193, 1
      %s195 = scalar_select %p192, %s193, %s194
      %p198 = pneg %p192
      %p199 = scmp.eq.s32.totalorder %s21, 3
      %p200 = por %p198, %p199
      %p201 = scmp.ne.s32.totalorder %s193, %s196
      %p202 = scmp.eq.s32.totalorder %s21, 0
      %p203 = por %p201, %p202
      %p204 = scmp.ne.s32.totalorder %s193, %s196
      %p205 = scmp.eq.s32.totalorder %s26, 3
      %p206 = por %p204, %p205
      %p207 = scmp.ne.s32.totalorder %s196, %s197
      %p208 = scmp.eq.s32.totalorder %s26, 0
      %p209 = por %p207, %p208
      %p210 = scmp.ne.s32.totalorder %s196, %s197
      %p211 = scmp.eq.s32.totalorder %s27, 3
      %p212 = por %p210, %p211
      %p214 = scmp.ne.s32.totalorder %s197, %s213
      %p215 = scmp.eq.s32.totalorder %s27, 0
      %p216 = por %p214, %p215
      %s218 = sadd.s32 %s217, 1
      %p221 = scmp.eq.s32.totalorder %s21, 3
      %p222 = scmp.ne.s32.totalorder %s217, %s219
      %p223 = scmp.eq.s32.totalorder %s21, 0
      %p224 = por %p222, %p223
      %p225 = scmp.ne.s32.totalorder %s217, %s219
      %p226 = scmp.eq.s32.totalorder %s26, 3
      %p227 = por %p225, %p226
      %p228 = scmp.ne.s32.totalorder %s219, %s220
      %p229 = scmp.eq.s32.totalorder %s26, 0
      %p230 = por %p228, %p229
      %p231 = scmp.ne.s32.totalorder %s219, %s220
      %p232 = scmp.eq.s32.totalorder %s27, 3
      %p233 = por %p231, %p232
      %p235 = scmp.ne.s32.totalorder %s220, %s234
      %p236 = scmp.eq.s32.totalorder %s27, 0
      %p237 = por %p235, %p236
      %s238 = ssub.s32 %s28, %s40
      %s239 = ssub.s32 %s29, %s36
      %s240 = sor.u32 %s238, %s239
      %p241 = scmp.eq.s32.totalorder %s240, 0
      %s243 = sadd.s32 %s242, 1
      %s244 = scalar_select %p241, %s242, %s243
      %p247 = pneg %p241
      %p248 = scmp.eq.s32.totalorder %s21, 3
      %p249 = por %p247, %p248
      %p250 = scmp.ne.s32.totalorder %s242, %s245
      %p251 = scmp.eq.s32.totalorder %s21, 0
      %p252 = por %p250, %p251
      %p253 = scmp.ne.s32.totalorder %s242, %s245
      %p254 = scmp.eq.s32.totalorder %s26, 3
      %p255 = por %p253, %p254
      %p256 = scmp.ne.s32.totalorder %s245, %s246
      %p257 = scmp.eq.s32.totalorder %s26, 0
      %p258 = por %p256, %p257
      %p259 = scmp.ne.s32.totalorder %s245, %s246
      %p260 = scmp.eq.s32.totalorder %s27, 3
      %p261 = por %p259, %p260
      %p263 = scmp.ne.s32.totalorder %s246, %s262
      %p264 = scmp.eq.s32.totalorder %s27, 0
      %p265 = por %p263, %p264
      %s266 = ssub.s32 %s28, %s40
      %s267 = ssub.s32 %s29, %s36
      %s268 = sor.u32 %s266, %s267
      %p269 = scmp.eq.s32.totalorder %s268, 0
      %s271 = sadd.s32 %s270, 1
      %s272 = scalar_select %p269, %s270, %s271
      %p275 = pneg %p269
      %p276 = scmp.eq.s32.totalorder %s21, 3
      %p277 = por %p275, %p276
      %p278 = scmp.ne.s32.totalorder %s270, %s273
      %p279 = scmp.eq.s32.totalorder %s21, 0
      %p280 = por %p278, %p279
      %p281 = scmp.ne.s32.totalorder %s270, %s273
      %p282 = scmp.eq.s32.totalorder %s26, 3
      %p283 = por %p281, %p282
      %p284 = scmp.ne.s32.totalorder %s273, %s274
      %p285 = scmp.eq.s32.totalorder %s26, 0
      %p286 = por %p284, %p285
      %p287 = scmp.ne.s32.totalorder %s273, %s274
      %p288 = scmp.eq.s32.totalorder %s27, 3
      %p289 = por %p287, %p288
      %p291 = scmp.ne.s32.totalorder %s274, %s290
      %p292 = scmp.eq.s32.totalorder %s27, 0
      %p293 = por %p291, %p292
      %p294 = scmp.le.s32.totalorder 1, %s21
      %p295 = scmp.lt.s32.totalorder %s21, 5
      %p296 = pnand %p294, %p295
      %p297 = pneg %p296
      // Predicated region
      $region9: #{tpu_custom_call.1} parent=5 // pred_check
        _
      $region10: #{tpu_custom_call.1} parent=5 // pred_check_branch
        %299 = sbr.rel (%p296) target = $region12
      $region11: #{tpu_custom_call.1} parent=5 // pred_region
        %s300 = ssub.s32 %s21, 1
        // Predicated region
        $region13: #{tpu_custom_call.1} parent=11 // pred_check
          %p301 = pneg %p230
        $region14: #{tpu_custom_call.1} parent=11 // pred_check_branch
          %303 = sbr.rel (%p301) target = $region16
        $region15: #{tpu_custom_call.1} parent=11 // pred_region
          _
        $region16: #{tpu_custom_call.1} parent=11 // pred_fallthru
          _
      $region12: #{tpu_custom_call.1} parent=5 // pred_fallthru
        _
      %p304 = scmp.lt.s32.totalorder %s21, 4
      // Predicated region
      $region17: #{tpu_custom_call.1} parent=5 // pred_check
        %p305 = pneg %p304
      $region18: #{tpu_custom_call.1} parent=5 // pred_check_branch
        %307 = sbr.rel (%p305) target = $region20
      $region19: #{tpu_custom_call.1} parent=5 // pred_region
        // Predicated region
        $region21: #{tpu_custom_call.1} parent=19 // pred_check
          %p308 = pneg %p55
        $region22: #{tpu_custom_call.1} parent=19 // pred_check_branch
          %310 = sbr.rel (%p308) target = $region24
        $region23: #{tpu_custom_call.1} parent=19 // pred_region
          %s311 = smul.u32 4, %s29
          %s312 = ssub.s32 9, %s311
          %p313 = scmp.lt.s32.totalorder %s312, 4
          %s314 = scalar_select %p313, %s312, 4
          %s315 = smul.u32 64, %s314
          %s316 = smul.u32 %s315, 2
          %p317 = scmp.lt.s32.totalorder %s28, 1
          %s318 = scalar_select %p317, %s28, 1
          %p319 = scmp.lt.s32.totalorder %s311, 8
          %s320 = scalar_select %p319, %s311, 8
          %s321 = smul.addr %s320, 2
          %s322 = smul.addr %s318, 18
          %s323 = sadd.s32 %s321, %s322
          %s324 = smul.addr %s323, 4
          %s325 = scalar_lea.vmem %s0, %s324
          %s326 = smul.u32 4, %s29
          %s327 = ssub.s32 9, %s326
          %p328 = scmp.lt.s32.totalorder %s327, 4
          %s329 = scalar_select %p328, %s327, 4
          %s330 = smul.u32 64, %s329
          %s331 = smul.u32 %s330, 2
        $region24: #{tpu_custom_call.1} parent=19 // pred_fallthru
          _
        // Predicated region
        $region25: #{tpu_custom_call.1} parent=19 // pred_check
          %p332 = pneg %p87
        $region26: #{tpu_custom_call.1} parent=19 // pred_check_branch
          %334 = sbr.rel (%p332) target = $region28
        $region27: #{tpu_custom_call.1} parent=19 // pred_region
          %s335 = sadd.s32 %s29, 1
          %s336 = smul.u32 %s335, 4
          %p337 = scmp.lt.s32.totalorder %s28, 1
          %s338 = scalar_select %p337, %s28, 1
          %p339 = scmp.lt.s32.totalorder %s336, 8
          %s340 = scalar_select %p339, %s336, 8
          %s341 = smul.addr %s340, 2
          %s342 = smul.addr %s338, 18
          %s343 = sadd.s32 %s341, %s342
          %s344 = smul.addr %s343, 4
          %s345 = scalar_lea.vmem %s1, %s344
          %s346 = sadd.s32 %s29, 1
          %s347 = smul.u32 %s346, 4
        $region28: #{tpu_custom_call.1} parent=19 // pred_fallthru
          _
        // Predicated region
        $region29: #{tpu_custom_call.1} parent=19 // pred_check
          %p348 = pneg %p115
        $region30: #{tpu_custom_call.1} parent=19 // pred_check_branch
          %350 = sbr.rel (%p348) target = $region32
        $region31: #{tpu_custom_call.1} parent=19 // pred_region
          %s351 = smul.u32 4, %s29
          %s352 = ssub.s32 9, %s351
          %p353 = scmp.lt.s32.totalorder %s352, 4
          %s354 = scalar_select %p353, %s352, 4
          %s355 = smul.u32 64, %s354
          %p356 = scmp.lt.s32.totalorder %s28, 1
          %s357 = scalar_select %p356, %s28, 1
          %p358 = scmp.lt.s32.totalorder %s351, 8
          %s359 = scalar_select %p358, %s351, 8
          %s360 = smul.addr %s357, 9
          %s361 = sadd.s32 %s359, %s360
          %s362 = smul.addr %s361, 4
          %s363 = scalar_lea.vmem %s2, %s362
          %s364 = smul.u32 4, %s29
          %s365 = ssub.s32 9, %s364
          %p366 = scmp.lt.s32.totalorder %s365, 4
          %s367 = scalar_select %p366, %s365, 4
          %s368 = smul.u32 64, %s367
        $region32: #{tpu_custom_call.1} parent=19 // pred_fallthru
          _
        // Predicated region
        $region33: #{tpu_custom_call.1} parent=19 // pred_check
          %p369 = pneg %p147
        $region34: #{tpu_custom_call.1} parent=19 // pred_check_branch
          %371 = sbr.rel (%p369) target = $region36
        $region35: #{tpu_custom_call.1} parent=19 // pred_region
          %s372 = sadd.s32 %s29, 1
          %s373 = smul.u32 %s372, 4
          %p374 = scmp.lt.s32.totalorder %s28, 1
          %s375 = scalar_select %p374, %s28, 1
          %p376 = scmp.lt.s32.totalorder %s373, 8
          %s377 = scalar_select %p376, %s373, 8
          %s378 = smul.addr %s375, 9
          %s379 = sadd.s32 %s377, %s378
          %s380 = smul.addr %s379, 4
          %s381 = scalar_lea.vmem %s3, %s380
          %s382 = sadd.s32 %s29, 1
          %s383 = smul.u32 %s382, 4
        $region36: #{tpu_custom_call.1} parent=19 // pred_fallthru
          _
        // Predicated region
        $region37: #{tpu_custom_call.1} parent=19 // pred_check
          %p384 = pneg %p175
        $region38: #{tpu_custom_call.1} parent=19 // pred_check_branch
          %386 = sbr.rel (%p384) target = $region40
        $region39: #{tpu_custom_call.1} parent=19 // pred_region
          %s387 = smul.u32 4, %s29
          %p388 = scmp.lt.s32.totalorder %s28, 1
          %s389 = scalar_select %p388, %s28, 1
          %p390 = scmp.lt.s32.totalorder %s387, 7
          %s391 = scalar_select %p390, %s387, 7
          %s392 = smul.addr %s391, 2
          %s393 = smul.addr %s389, 16
          %s394 = sadd.s32 %s392, %s393
          %s395 = smul.addr %s394, 4
          %s396 = scalar_lea.vmem %s4, %s395
          %s397 = smul.u32 4, %s29
        $region40: #{tpu_custom_call.1} parent=19 // pred_fallthru
          _
        // Predicated region
        $region41: #{tpu_custom_call.1} parent=19 // pred_check
          %p398 = pneg %p203
        $region42: #{tpu_custom_call.1} parent=19 // pred_check_branch
          %400 = sbr.rel (%p398) target = $region44
        $region43: #{tpu_custom_call.1} parent=19 // pred_region
          %s401 = smul.u32 4, %s29
          %p402 = scmp.lt.s32.totalorder %s28, 1
          %s403 = scalar_select %p402, %s28, 1
          %p404 = scmp.lt.s32.totalorder %s401, 7
          %s405 = scalar_select %p404, %s401, 7
          %s406 = smul.addr %s403, 8
          %s407 = sadd.s32 %s405, %s406
          %s408 = smul.addr %s407, 4
          %s409 = scalar_lea.vmem %s5, %s408
          %s410 = smul.u32 4, %s29
        $region44: #{tpu_custom_call.1} parent=19 // pred_fallthru
          _
      $region20: #{tpu_custom_call.1} parent=5 // pred_fallthru
        _
      %p411 = scmp.le.s32.totalorder 1, %s21
      %p412 = scmp.lt.s32.totalorder %s21, 5
      %p413 = pnand %p411, %p412
      %p414 = pneg %p413
      // Predicated region
      $region45: #{tpu_custom_call.1} parent=5 // pred_check
        _
      $region46: #{tpu_custom_call.1} parent=5 // pred_check_branch
        %416 = sbr.rel (%p413) target = $region48
      $region47: #{tpu_custom_call.1} parent=5 // pred_region
        %s417 = ssub.s32 %s21, 1
        %s418 = smul.u32 4, %s31
        %s419 = ssub.s32 9, %s418
        %p420 = scmp.lt.s32.totalorder %s419, 4
        %s421 = scalar_select %p420, %s419, 4
        %s422 = smul.u32 64, %s421
        %s423 = smul.u32 %s422, 2
        %p424 = scmp.lt.s32.totalorder %s30, 1
        %s425 = scalar_select %p424, %s30, 1
        %p426 = scmp.lt.s32.totalorder %s418, 8
        %s427 = scalar_select %p426, %s418, 8
        %s428 = smul.addr %s427, 2
        %s429 = smul.addr %s425, 18
        %s430 = sadd.s32 %s428, %s429
        %s431 = smul.addr %s430, 4
        %s432 = scalar_lea.vmem %s0, %s431
        %p433 = pneg %p61
        %p434 = pneg %p58
        %s435 = sadd.s32 %s31, 1
        %s436 = smul.u32 %s435, 4
        %p437 = scmp.lt.s32.totalorder %s30, 1
        %s438 = scalar_select %p437, %s30, 1
        %p439 = scmp.lt.s32.totalorder %s436, 8
        %s440 = scalar_select %p439, %s436, 8
        %s441 = smul.addr %s440, 2
        %s442 = smul.addr %s438, 18
        %s443 = sadd.s32 %s441, %s442
        %s444 = smul.addr %s443, 4
        %s445 = scalar_lea.vmem %s1, %s444
        %p446 = pneg %p93
        %p447 = pneg %p90
        %s448 = smul.u32 4, %s31
        %s449 = ssub.s32 9, %s448
        %p450 = scmp.lt.s32.totalorder %s449, 4
        %s451 = scalar_select %p450, %s449, 4
        %s452 = smul.u32 64, %s451
        %p453 = scmp.lt.s32.totalorder %s30, 1
        %s454 = scalar_select %p453, %s30, 1
        %p455 = scmp.lt.s32.totalorder %s448, 8
        %s456 = scalar_select %p455, %s448, 8
        %s457 = smul.addr %s454, 9
        %s458 = sadd.s32 %s456, %s457
        %s459 = smul.addr %s458, 4
        %s460 = scalar_lea.vmem %s2, %s459
        %p461 = pneg %p121
        %p462 = pneg %p118
        %s463 = sadd.s32 %s31, 1
        %s464 = smul.u32 %s463, 4
        %p465 = scmp.lt.s32.totalorder %s30, 1
        %s466 = scalar_select %p465, %s30, 1
        %p467 = scmp.lt.s32.totalorder %s464, 8
        %s468 = scalar_select %p467, %s464, 8
        %s469 = smul.addr %s466, 9
        %s470 = sadd.s32 %s468, %s469
        %s471 = smul.addr %s470, 4
        %s472 = scalar_lea.vmem %s3, %s471
        %p473 = pneg %p153
        %p474 = pneg %p150
        %s475 = smul.u32 4, %s31
        %p476 = scmp.lt.s32.totalorder %s30, 1
        %s477 = scalar_select %p476, %s30, 1
        %p478 = scmp.lt.s32.totalorder %s475, 7
        %s479 = scalar_select %p478, %s475, 7
        %s480 = smul.addr %s479, 2
        %s481 = smul.addr %s477, 16
        %s482 = sadd.s32 %s480, %s481
        %s483 = smul.addr %s482, 4
        %s484 = scalar_lea.vmem %s4, %s483
        %p485 = pneg %p181
        %p486 = pneg %p178
        %s487 = smul.u32 4, %s31
        %p488 = scmp.lt.s32.totalorder %s30, 1
        %s489 = scalar_select %p488, %s30, 1
        %p490 = scmp.lt.s32.totalorder %s487, 7
        %s491 = scalar_select %p490, %s487, 7
        %s492 = smul.addr %s489, 8
        %s493 = sadd.s32 %s491, %s492
        %s494 = smul.addr %s493, 4
        %s495 = scalar_lea.vmem %s5, %s494
        %p496 = pneg %p209
        %p497 = pneg %p206
        %p498 = pneg %p230
        %p499 = pneg %p227
        %p500 = pneg %p258
        %p501 = pneg %p255
        %s502 = sand.u32 %s245, 1
        %s503 = scalar_lea.sflag [#allocation3], %s502
        %s504 = sand.u32 %s245, 1
        %s505 = smul.addr %s504, 16
        %s506 = scalar_lea.vmem [#allocation2], %s505
        %p507 = pneg %p286
        %p508 = pneg %p283
        %s509 = sand.u32 %s273, 1
        %s510 = scalar_lea.sflag [#allocation5], %s509
        %s511 = sand.u32 %s273, 1
        %s512 = smul.addr %s511, 2
        %s513 = scalar_lea.vmem [#allocation4], %s512
        %s514 = smul.u32 4, %s31
        %s515 = ssub.s32 9, %s514
        %p516 = scmp.lt.s32.totalorder %s515, 4
        %s517 = scalar_select %p516, %s515, 4
        %s518 = smul.u32 64, %s517
        %s519 = smul.u32 %s518, 2
        %p520 = scmp.lt.s32.totalorder %s30, 1
        %s521 = scalar_select %p520, %s30, 1
        %p522 = scmp.lt.s32.totalorder %s514, 8
        %s523 = scalar_select %p522, %s514, 8
        %s524 = smul.addr %s523, 2
        %s525 = smul.addr %s521, 18
        %s526 = sadd.s32 %s524, %s525
        %s527 = smul.addr %s526, 4
        %s528 = scalar_lea.vmem %s0, %s527
        %s529 = smul.u32 4, %s31
        %s530 = ssub.s32 9, %s529
        %p531 = scmp.lt.s32.totalorder %s530, 4
        %s532 = scalar_select %p531, %s530, 4
        %s533 = smul.u32 64, %s532
        %s534 = smul.u32 %s533, 2
        %s535 = sadd.s32 %s31, 1
        %s536 = smul.u32 %s535, 4
        %p537 = scmp.lt.s32.totalorder %s30, 1
        %s538 = scalar_select %p537, %s30, 1
        %p539 = scmp.lt.s32.totalorder %s536, 8
        %s540 = scalar_select %p539, %s536, 8
        %s541 = smul.addr %s540, 2
        %s542 = smul.addr %s538, 18
        %s543 = sadd.s32 %s541, %s542
        %s544 = smul.addr %s543, 4
        %s545 = scalar_lea.vmem %s1, %s544
        %s546 = sadd.s32 %s31, 1
        %s547 = smul.u32 %s546, 4
        %s548 = smul.u32 4, %s31
        %s549 = ssub.s32 9, %s548
        %p550 = scmp.lt.s32.totalorder %s549, 4
        %s551 = scalar_select %p550, %s549, 4
        %s552 = smul.u32 64, %s551
        %p553 = scmp.lt.s32.totalorder %s30, 1
        %s554 = scalar_select %p553, %s30, 1
        %p555 = scmp.lt.s32.totalorder %s548, 8
        %s556 = scalar_select %p555, %s548, 8
        %s557 = smul.addr %s554, 9
        %s558 = sadd.s32 %s556, %s557
        %s559 = smul.addr %s558, 4
        %s560 = scalar_lea.vmem %s2, %s559
        %s561 = smul.u32 4, %s31
        %s562 = ssub.s32 9, %s561
        %p563 = scmp.lt.s32.totalorder %s562, 4
        %s564 = scalar_select %p563, %s562, 4
        %s565 = smul.u32 64, %s564
        %s566 = sadd.s32 %s31, 1
        %s567 = smul.u32 %s566, 4
        %p568 = scmp.lt.s32.totalorder %s30, 1
        %s569 = scalar_select %p568, %s30, 1
        %p570 = scmp.lt.s32.totalorder %s567, 8
        %s571 = scalar_select %p570, %s567, 8
        %s572 = smul.addr %s569, 9
        %s573 = sadd.s32 %s571, %s572
        %s574 = smul.addr %s573, 4
        %s575 = scalar_lea.vmem %s3, %s574
        %s576 = sadd.s32 %s31, 1
        %s577 = smul.u32 %s576, 4
        %s578 = smul.u32 4, %s31
        %p579 = scmp.lt.s32.totalorder %s30, 1
        %s580 = scalar_select %p579, %s30, 1
        %p581 = scmp.lt.s32.totalorder %s578, 7
        %s582 = scalar_select %p581, %s578, 7
        %s583 = smul.addr %s582, 2
        %s584 = smul.addr %s580, 16
        %s585 = sadd.s32 %s583, %s584
        %s586 = smul.addr %s585, 4
        %s587 = scalar_lea.vmem %s4, %s586
        %s588 = smul.u32 4, %s31
        %s589 = smul.u32 4, %s31
        %p590 = scmp.lt.s32.totalorder %s30, 1
        %s591 = scalar_select %p590, %s30, 1
        %p592 = scmp.lt.s32.totalorder %s589, 7
        %s593 = scalar_select %p592, %s589, 7
        %s594 = smul.addr %s591, 8
        %s595 = sadd.s32 %s593, %s594
        %s596 = smul.addr %s595, 4
        %s597 = scalar_lea.vmem %s5, %s596
        %s598 = smul.u32 4, %s31
        %v600 = vld [vmem:[%s528] sm:$0xf]
        %v601 = vld [vmem:[%s528 + $0x4] sm:$0x1]
        %v602 = vld [vmem:[%s528 + $0x8] sm:$0xf]
        %v603 = vld [vmem:[%s528 + $0xc] sm:$0x1]
        %v604 = vld [vmem:[%s528 + $0x10] sm:$0xf]
        %v605 = vld [vmem:[%s528 + $0x14] sm:$0x1]
        %v606 = vld [vmem:[%s528 + $0x18] sm:$0xf]
        %v607 = vld [vmem:[%s528 + $0x1c] sm:$0x1]
        %v608 = vld [vmem:[%s560] sm:$0xf]
        %v609 = vld [vmem:[%s560 + $0x4] sm:$0xf]
        %v610 = vld [vmem:[%s560 + $0x8] sm:$0xf]
        %v611 = vld [vmem:[%s560 + $0xc] sm:$0xf]
        %v612 = vld [vmem:[%s587] sm:$0xf]
        %v613 = vld [vmem:[%s587 + $0x4] sm:$0x1]
        %v614 = vld [vmem:[%s587 + $0x8] sm:$0xf]
        %v615 = vld [vmem:[%s587 + $0xc] sm:$0x1]
        %v616 = vld [vmem:[%s587 + $0x10] sm:$0xf]
        %v617 = vld [vmem:[%s587 + $0x14] sm:$0x1]
        %v618 = vld [vmem:[%s587 + $0x18] sm:$0xf]
        %v619 = vld [vmem:[%s587 + $0x1c] sm:$0x1]
        %v620 = vld [vmem:[%s597] sm:$0xf]
        %v621 = vld [vmem:[%s597 + $0x4] sm:$0xf]
        %v622 = vld [vmem:[%s597 + $0x8] sm:$0xf]
        %v623 = vld [vmem:[%s597 + $0xc] sm:$0xf]
        %v624 = vld [vmem:[%s545] sm:$0xf]
        %v625 = vld [vmem:[%s545 + $0x4] sm:$0x1]
        %v626 = vld [vmem:[%s575] sm:$0xf]
        %vm627 = vsmask.f32 3328
        %vm628 = vsmask.f32 7440
        %vm629 = vmor %vm627, %vm628
        %v631 = vshrl.u32 %v600, 16
        %v633 = vrot.slane %v631, 4
        %v634 = vshll.u32 %v600, 16
        %v636 = vrot.slane %v634, 5
        %v637 = vor.u32 %v633, %v636
        %v638 = vrot.slane %v637, 4
        %v640 = vshll.u32 %v601, 16
        %v642 = vrot.slane %v640, 5
        %v643 = vsel %vm629, %v638, %v642
        %v645 = vshrl.u32 %v602, 16
        %v647 = vrot.slane %v645, 4
        %v648 = vshll.u32 %v602, 16
        %v650 = vrot.slane %v648, 5
        %v651 = vor.u32 %v647, %v650
        %v652 = vrot.slane %v651, 4
        %v654 = vshll.u32 %v603, 16
        %v656 = vrot.slane %v654, 5
        %v657 = vsel %vm629, %v652, %v656
        %v659 = vshrl.u32 %v604, 16
        %v661 = vrot.slane %v659, 4
        %v662 = vshll.u32 %v604, 16
        %v664 = vrot.slane %v662, 5
        %v665 = vor.u32 %v661, %v664
        %v666 = vrot.slane %v665, 4
        %v668 = vshll.u32 %v605, 16
        %v670 = vrot.slane %v668, 5
        %v671 = vsel %vm629, %v666, %v670
        %v673 = vshrl.u32 %v606, 16
        %v675 = vrot.slane %v673, 4
        %v676 = vshll.u32 %v606, 16
        %v678 = vrot.slane %v676, 5
        %v679 = vor.u32 %v675, %v678
        %v680 = vrot.slane %v679, 4
        %v682 = vshll.u32 %v607, 16
        %v684 = vrot.slane %v682, 5
        %v685 = vsel %vm629, %v680, %v684
        %v687 = vshrl.u32 %v612, 16
        %v689 = vrot.slane %v687, 4
        %v690 = vshll.u32 %v612, 16
        %v692 = vrot.slane %v690, 5
        %v693 = vor.u32 %v689, %v692
        %v694 = vrot.slane %v693, 4
        %v696 = vshll.u32 %v613, 16
        %v698 = vrot.slane %v696, 5
        %v699 = vsel %vm629, %v694, %v698
        %v701 = vshrl.u32 %v614, 16
        %v703 = vrot.slane %v701, 4
        %v704 = vshll.u32 %v614, 16
        %v706 = vrot.slane %v704, 5
        %v707 = vor.u32 %v703, %v706
        %v708 = vrot.slane %v707, 4
        %v710 = vshll.u32 %v615, 16
        %v712 = vrot.slane %v710, 5
        %v713 = vsel %vm629, %v708, %v712
        %v715 = vshrl.u32 %v616, 16
        %v717 = vrot.slane %v715, 4
        %v718 = vshll.u32 %v616, 16
        %v720 = vrot.slane %v718, 5
        %v721 = vor.u32 %v717, %v720
        %v722 = vrot.slane %v721, 4
        %v724 = vshll.u32 %v617, 16
        %v726 = vrot.slane %v724, 5
        %v727 = vsel %vm629, %v722, %v726
        %v729 = vshrl.u32 %v618, 16
        %v731 = vrot.slane %v729, 4
        %v732 = vshll.u32 %v618, 16
        %v734 = vrot.slane %v732, 5
        %v735 = vor.u32 %v731, %v734
        %v736 = vrot.slane %v735, 4
        %v738 = vshll.u32 %v619, 16
        %v740 = vrot.slane %v738, 5
        %v741 = vsel %vm629, %v736, %v740
        %v743 = vshrl.u32 %v624, 16
        %v745 = vrot.slane %v743, 4
        %v746 = vshll.u32 %v624, 16
        %v748 = vrot.slane %v746, 5
        %v749 = vor.u32 %v745, %v748
        %v750 = vrot.slane %v749, 4
        %v752 = vshll.u32 %v625, 16
        %v754 = vrot.slane %v752, 5
        %v755 = vsel %vm629, %v750, %v754
        %v760 = vunpack.c.l.b16 %v600
        %v761 = vunpack.c.l.b16 %v602
        %v762 = vunpack.c.l.b16 %v604
        %v763 = vunpack.c.l.b16 %v606
        %v764 = vpack.c.b16 %v761, %v760
        %v765 = vpack.c.b16 %v763, %v762
        %v770 = vunpack.c.l.b16 %v608
        %v771 = vunpack.c.l.b16 %v609
        %v772 = vunpack.c.l.b16 %v610
        %v773 = vunpack.c.l.b16 %v611
        %v774 = vpack.c.b16 %v771, %v770
        %v775 = vpack.c.b16 %v773, %v772
        %776 = vrot.lane.b32.xlu0 %v774, 4
        %v777 = vpop.permute.xlu0 %776
        %778 = vrot.lane.b32.xlu0 %v775, 4
        %v779 = vpop.permute.xlu0 %778
        %v780 = vunpack.c.l.b16 %v643
        %v781 = vunpack.c.l.b16 %v657
        %v782 = vunpack.c.l.b16 %v671
        %v783 = vunpack.c.l.b16 %v685
        %v784 = vpack.c.b16 %v781, %v780
        %v785 = vpack.c.b16 %v783, %v782
        %786 = vrot.lane.b32.xlu0 %v784, 8
        %v787 = vpop.permute.xlu0 %786
        %788 = vrot.lane.b32.xlu0 %v785, 8
        %v789 = vpop.permute.xlu0 %788
        %v794 = vunpack.c.l.b16 %v612
        %v795 = vunpack.c.l.b16 %v614
        %v796 = vunpack.c.l.b16 %v616
        %v797 = vunpack.c.l.b16 %v618
        %v798 = vpack.c.b16 %v795, %v794
        %v799 = vpack.c.b16 %v797, %v796
        %800 = vrot.lane.b32.xlu0 %v798, 12
        %v801 = vpop.permute.xlu0 %800
        %802 = vrot.lane.b32.xlu0 %v799, 12
        %v803 = vpop.permute.xlu0 %802
        %v808 = vunpack.c.l.b16 %v620
        %v809 = vunpack.c.l.b16 %v621
        %v810 = vunpack.c.l.b16 %v622
        %v811 = vunpack.c.l.b16 %v623
        %v812 = vpack.c.b16 %v809, %v808
        %v813 = vpack.c.b16 %v811, %v810
        %814 = vrot.lane.b32.xlu0 %v812, 16
        %v815 = vpop.permute.xlu0 %814
        %816 = vrot.lane.b32.xlu0 %v813, 16
        %v817 = vpop.permute.xlu0 %816
        %v818 = vunpack.c.l.b16 %v699
        %v819 = vunpack.c.l.b16 %v713
        %v820 = vunpack.c.l.b16 %v727
        %v821 = vunpack.c.l.b16 %v741
        %v822 = vpack.c.b16 %v819, %v818
        %v823 = vpack.c.b16 %v821, %v820
        %824 = vrot.lane.b32.xlu0 %v822, 20
        %v825 = vpop.permute.xlu0 %824
        %826 = vrot.lane.b32.xlu0 %v823, 20
        %v827 = vpop.permute.xlu0 %826
        %v829 = vunpack.c.l.b16 %v624
        %v830 = vpack.c.b16 %v762, %v761
        %v831 = vpack.c.b16 %v829, %v763
        %832 = vrot.lane.b32.xlu0 %v830, 24
        %v833 = vpop.permute.xlu0 %832
        %834 = vrot.lane.b32.xlu0 %v831, 24
        %v835 = vpop.permute.xlu0 %834
        %v837 = vunpack.c.l.b16 %v626
        %v838 = vpack.c.b16 %v772, %v771
        %v839 = vpack.c.b16 %v837, %v773
        %840 = vrot.lane.b32.xlu0 %v838, 28
        %v841 = vpop.permute.xlu0 %840
        %842 = vrot.lane.b32.xlu0 %v839, 28
        %v843 = vpop.permute.xlu0 %842
        %v844 = vunpack.c.l.b16 %v755
        %v845 = vpack.c.b16 %v782, %v781
        %v846 = vpack.c.b16 %v844, %v783
        %847 = vrot.lane.b32.xlu0 %v845, 32
        %v848 = vpop.permute.xlu0 %847
        %849 = vrot.lane.b32.xlu0 %v846, 32
        %v850 = vpop.permute.xlu0 %849
        %vm851 = vcmask 31744
        %v854 = vsel %vm851, %v764, %v777
        %v857 = vsel %vm851, %v765, %v779
        %vm858 = vcmask 64512
        %v860 = vsel %vm858, %v854, %v787
        %v862 = vsel %vm858, %v857, %v789
        %vm863 = vcmask 97280
        %v865 = vsel %vm863, %v860, %v801
        %v867 = vsel %vm863, %v862, %v803
        %vm868 = vcmask 130048
        %v870 = vsel %vm868, %v865, %v815
        %v872 = vsel %vm868, %v867, %v817
        %vm873 = vcmask 162816
        %v875 = vsel %vm873, %v870, %v825
        %v877 = vsel %vm873, %v872, %v827
        %vm878 = vcmask 195584
        %v880 = vsel %vm878, %v875, %v833
        %v882 = vsel %vm878, %v877, %v835
        %vm883 = vcmask 228352
        %v885 = vsel %vm883, %v880, %v841
        %v887 = vsel %vm883, %v882, %v843
        %vm888 = vcmask 261120
        %v890 = vsel %vm888, %v885, %v848
        %v892 = vsel %vm888, %v887, %v850
        %v893 = vld [vmem:[%s6] sm:$0xf]
        %v894 = vld [vmem:[%s6 + $0x4] sm:$0xf]
        %v895 = vld [vmem:[%s6 + $0x8] sm:$0xf]
        %v896 = vld [vmem:[%s6 + $0xc] sm:$0xf]
        %v897 = vld [vmem:[%s6 + $0x10] sm:$0x3]
        %v903 = vunpack.c.l.b16 %v893
        %v904 = vunpack.c.l.b16 %v894
        %v905 = vunpack.c.l.b16 %v895
        %v906 = vunpack.c.l.b16 %v896
        %v907 = vunpack.c.l.b16 %v897
        %v908 = vpack.c.b16 %v904, %v903
        %v909 = vpack.c.b16 %v906, %v905
        %v910 = vpack.c.b16 %v907, %v907
        %vm913 = vcmask 293888
        %v914 = vsel %vm913, %v890, 0
        %v916 = vsel %vm913, %v892, 0
        %vm918 = vcmask 1041408
        %v920 = vsel %vm918, %v910, 0
        %922 = vmatprep.subr.bf16.mxu0 0
        %923 = vmatpush1.bf16.msra.mxu0 %v908
        %924 = vmatprep.subr.bf16.mxu0 0
        %925 = vmatpush1.bf16.msra.mxu0 %v909
        %926 = vmatprep.subr.bf16.mxu0 0
        %927 = vmatpush1.bf16.msra.mxu0 %v920
        %928 = vmatprep.subr.bf16.mxu0 0
        %929 = vmatpush1.bf16.msra.mxu0 0
        %930 = vmatprep.subr.bf16.mxu0 0
        %931 = vmatpush1.bf16.msra.mxu0 0
        %932 = vmatprep.subr.bf16.mxu0 0
        %933 = vmatpush1.bf16.msra.mxu0 0
        %934 = vmatprep.subr.bf16.mxu0 0
        %935 = vmatpush1.bf16.msra.mxu0 0
        %936 = vmatprep.subr.bf16.mxu0 0
        %937 = vmatpush1.bf16.msra.mxu0 0
        %938 = vmatprep.subr.bf16.mxu0 0
        %939 = vmatpush1.bf16.msra.mxu0 0
        %940 = vmatprep.subr.bf16.mxu0 0
        %941 = vmatpush1.bf16.msra.mxu0 0
        %942 = vmatprep.subr.bf16.mxu0 0
        %943 = vmatpush1.bf16.msra.mxu0 0
        %944 = vmatprep.subr.bf16.mxu0 0
        %945 = vmatpush1.bf16.msra.mxu0 0
        %946 = vmatprep.subr.bf16.mxu0 0
        %947 = vmatpush1.bf16.msra.mxu0 0
        %948 = vmatprep.subr.bf16.mxu0 0
        %949 = vmatpush1.bf16.msra.mxu0 0
        %950 = vmatprep.subr.bf16.mxu0 0
        %951 = vmatpush1.bf16.msra.mxu0 0
        %952 = vmatprep.subr.bf16.mxu0 0
        %953 = vmatpush1.bf16.msra.mxu0 0
        %954 = vmatprep.mubr.bf16.mxu0 0
        %955 = vmatmul.mubr.bf16.gmra.mrb[0].mxu0 %v914
        %v956 = vpop.f32.mrb[0].mxu0
        %v957 = vadd.f32 0.0, %v956
        %v958 = vpop.f32.mrb[0].mxu0
        %v959 = vpop.f32.mrb[0].mxu0
        %v960 = vadd.f32 0.0, %v959
        %v961 = vpop.f32.mrb[0].mxu0
        %962 = vmatprep.mubr.bf16.mxu0 0
        %963 = vmatmul.mubr.bf16.gmra.mrb[0].mxu0 %v916
        %v964 = vpop.f32.mrb[0].mxu0
        %v965 = vadd.f32 0.0, %v964
        %v966 = vpop.f32.mrb[0].mxu0
        %v967 = vpop.f32.mrb[0].mxu0
        %v968 = vadd.f32 0.0, %v967
        %v969 = vpop.f32.mrb[0].mxu0
        %970 = vdwg.mxu0
        %v971 = vpack.c.bf16 %v960, %v957
        %v972 = vpack.c.bf16 %v968, %v965
        %v975 = vunpack.c.l.b16 %v971
        %v976 = vunpack.c.h.b16 %v971
        %v977 = vunpack.c.l.b16 %v972
        %v978 = vunpack.c.h.b16 %v972
        %v979 = vpack.c.b16 %v975, %v975
        %v980 = vpack.c.b16 %v976, %v976
        %v981 = vpack.c.b16 %v977, %v977
        %v982 = vpack.c.b16 %v978, %v978
        %987 = vst [vmem:[%s506] sm:$0xf] %v979
        %988 = vst [vmem:[%s506 + $0x4] sm:$0xf] %v980
        %989 = vst [vmem:[%s506 + $0x8] sm:$0xf] %v981
        %990 = vst [vmem:[%s506 + $0xc] sm:$0xf] %v982
        %v991 = vadd.f32 %v957, %v960
        %v992 = vadd.f32 %v991, %v965
        %v993 = vadd.f32 %v992, %v968
        %v994 = vrot.slane %v993, 4
        %v995 = vadd.f32 %v993, %v994
        %v996 = vrot.slane %v995, 2
        %v997 = vadd.f32 %v995, %v996
        %v998 = vrot.slane %v997, 1
        %v999 = vadd.f32 %v997, %v998
        %1000 = vst [vmem:[%s513] sm:$0x1] %v999
        %v1001 = vmul.f32 %v957, %v957
        %v1002 = vmul.f32 %v960, %v960
        %v1003 = vmul.f32 %v965, %v965
        %v1004 = vmul.f32 %v968, %v968
        %v1005 = vadd.f32 %v1001, %v1002
        %v1006 = vadd.f32 %v1005, %v1003
        %v1007 = vadd.f32 %v1006, %v1004
        %v1008 = vrot.slane %v1007, 4
        %v1009 = vadd.f32 %v1007, %v1008
        %v1010 = vrot.slane %v1009, 2
        %v1011 = vadd.f32 %v1009, %v1010
        %v1012 = vrot.slane %v1011, 1
        %v1013 = vadd.f32 %v1011, %v1012
        %1014 = vst [vmem:[%s513 + $0x1] sm:$0x1] %v1013
        %s1015 = sand.u32 %s245, 1
        %s1016 = scalar_lea.sflag [#allocation3], %s1015
        %s1017 = sand.u32 %s245, 1
        %s1018 = smul.addr %s1017, 16
        %s1019 = scalar_lea.vmem [#allocation2], %s1018
        %s1020 = sand.u32 %s273, 1
        %s1021 = scalar_lea.sflag [#allocation5], %s1020
        %s1022 = sand.u32 %s273, 1
        %s1023 = smul.addr %s1022, 2
        %s1024 = scalar_lea.vmem [#allocation4], %s1023
        // Predicated region
        $region49: #{tpu_custom_call.1} parent=47 // pred_check
          %p1025 = pneg %p255
        $region50: #{tpu_custom_call.1} parent=47 // pred_check_branch
          %1027 = sbr.rel (%p1025) target = $region52
        $region51: #{tpu_custom_call.1} parent=47 // pred_region
          %s1029 = ssub.s32 256, 256
          %1030 = vsyncadd %s1016, %s1029
          %s1031 = smul.addr %s31, 4
          %s1032 = smul.addr %s30, 8
          %s1033 = sadd.s32 %s1031, %s1032
          %s1034 = smul.addr %s1033, 64
          %s1035 = scalar_lea.hbm %s7, %s1034
          %s1036 = sshll.u32 %s1019, 4
          %s1037 = int_to_ptr.vmem [resolvable:$true] %s1036
          %1042 = dma.vmem_to_hbm [thread:$0]  %s1037, 256, %s1035, %s1016, 64, 64, 4
        $region52: #{tpu_custom_call.1} parent=47 // pred_fallthru
          _
        // Predicated region
        $region53: #{tpu_custom_call.1} parent=47 // pred_check
          %p1043 = pneg %p283
        $region54: #{tpu_custom_call.1} parent=47 // pred_check_branch
          %1045 = sbr.rel (%p1043) target = $region56
        $region55: #{tpu_custom_call.1} parent=47 // pred_region
          %s1047 = ssub.s32 32, 32
          %1048 = vsyncadd %s1021, %s1047
          %s1049 = smul.addr %s30, 2
          %s1050 = sadd.s32 %s31, %s1049
          %s1051 = smul.addr %s1050, 32
          %s1052 = scalar_lea.hbm %s8, %s1051
          %s1054 = sshll.u32 %s1024, 4
          %s1055 = int_to_ptr.vmem [resolvable:$true] %s1054
          %1057 = dma.vmem_to_hbm [thread:$0]  %s1055, 32, %s1052, %s1021
        $region56: #{tpu_custom_call.1} parent=47 // pred_fallthru
          _
      $region48: #{tpu_custom_call.1} parent=5 // pred_fallthru
        _
      %p1058 = scmp.le.s32.totalorder 2, %s21
      // Predicated region
      $region57: #{tpu_custom_call.1} parent=5 // pred_check
        %p1059 = pneg %p1058
      $region58: #{tpu_custom_call.1} parent=5 // pred_check_branch
        %1061 = sbr.rel (%p1059) target = $region60
      $region59: #{tpu_custom_call.1} parent=5 // pred_region
        %s1062 = ssub.s32 %s21, 2
        // Predicated region
        $region61: #{tpu_custom_call.1} parent=59 // pred_check
          %p1063 = pneg %p261
        $region62: #{tpu_custom_call.1} parent=59 // pred_check_branch
          %1065 = sbr.rel (%p1063) target = $region64
        $region63: #{tpu_custom_call.1} parent=59 // pred_region
          %s1066 = sand.u32 %s246, 1
          %s1067 = scalar_lea.sflag [#allocation3], %s1066
          %s1068 = sand.u32 %s246, 1
          %s1069 = smul.addr %s1068, 16
          %s1070 = scalar_lea.vmem [#allocation2], %s1069
          %1071 = dma.done %s1067, 256
        $region64: #{tpu_custom_call.1} parent=59 // pred_fallthru
          _
        // Predicated region
        $region65: #{tpu_custom_call.1} parent=59 // pred_check
          %p1072 = pneg %p289
        $region66: #{tpu_custom_call.1} parent=59 // pred_check_branch
          %1074 = sbr.rel (%p1072) target = $region68
        $region67: #{tpu_custom_call.1} parent=59 // pred_region
          %s1075 = sand.u32 %s274, 1
          %s1076 = scalar_lea.sflag [#allocation5], %s1075
          %s1077 = sand.u32 %s274, 1
          %s1078 = smul.addr %s1077, 2
          %s1079 = scalar_lea.vmem [#allocation4], %s1078
          %1080 = dma.done %s1076, 32
        $region68: #{tpu_custom_call.1} parent=59 // pred_fallthru
          _
      $region60: #{tpu_custom_call.1} parent=5 // pred_fallthru
        _
    $region6: #{tpu_custom_call.1} parent=1 // loop_footer
      %s25 = sadd.s32 1, %s21
    $region7: #{tpu_custom_call.1} parent=1 // loop_footer_branch
      %20 = sbr.rel target = $region3
    $region8: #{tpu_custom_call.1} parent=1 // loop_exit
      _
    %1081 = vsyncpa [#allocation3], 1
    %s1082 = scalar_lea.sflag [#allocation3], 1
    %1083 = vsyncpa %s1082, 1
    %1084 = vsyncpa [#allocation5], 1
    %s1085 = scalar_lea.sflag [#allocation5], 1
    %1086 = vsyncpa %s1085, 1

</llo_original>
